<compile_context>
chip_gen: v7x
topology: tpu7x:2x2x1
jax: 0.10.0
libtpu: 0.0.40
codegen_flags: <defaults>
</compile_context>

<pallas_src>
import functools

import jax
import jax.numpy as jnp
from jax.experimental import pallas as pl
from jax.experimental.pallas import tpu as pltpu


PATCH = 4          # patch_embed kernel/stride
LANE = 128         # TPU lane width
TM = 128           # row tile (multiple of 8; matches v5e MXU, fine on v6e/v7x)


def _round_up(x, m):
    return (x + m - 1) // m * m


def _pad2d(a, rows, cols):
    return jnp.pad(a, ((0, rows - a.shape[0]), (0, cols - a.shape[1])))


# -----------------------------------------------------------------------------
# Fused Pallas kernel: patch-embed + pos_embed + Linear/LayerNorm + head
# -----------------------------------------------------------------------------
def _fused_rec_kernel(xp_ref, pos_ref, pw_ref, pb_ref,
                      lnw_ref, lnb_ref, g_ref, beta_ref,
                      dw_ref, db_ref, o_ref, *, d_real):
    # 1) encoder.patch_embed: Conv2d(p, stride=p) lowered to matmul (bf16 MXU,
    #    f32 accumulation), plus bias and positional embedding.
    tok = jnp.dot(xp_ref[...], pw_ref[...], preferred_element_type=jnp.float32)
    tok = tok + pb_ref[...] + pos_ref[...].astype(jnp.float32)
    # TODO(synk): the ViT transformer blocks of create_encoder() are external
    # to RecModel and are not reproduced here.

    # 2) RecModel.linear_norm = Linear(num_features, d_embedding) -> LayerNorm.
    #    NOTE: the Linear bias is kept — it is per-feature over the normalized
    #    dim, so it does NOT cancel under LayerNorm.
    y = jnp.dot(tok.astype(jnp.bfloat16), lnw_ref[...],
                preferred_element_type=jnp.float32)
    y = y + lnb_ref[...]
    # Padded columns of y are exactly zero, so plain sums over the padded lane
    # dim divided by the *real* d_embedding give exact mean / E[y^2].
    inv_d = 1.0 / d_real
    mean = jnp.sum(y, axis=-1, keepdims=True) * inv_d
    ex2 = jnp.sum(y * y, axis=-1, keepdims=True) * inv_d
    var = ex2 - mean * mean
    y_hat = (y - mean) * jax.lax.rsqrt(var + 1e-5)
    dec_in = y_hat * g_ref[...] + beta_ref[...]

    # 3) decoder head.
    # TODO(synk): create_decoder() builds an external autoregressive attention
    # decoder; stubbed as a per-token classifier head.
    logits = jnp.dot(dec_in.astype(jnp.bfloat16), dw_ref[...],
                     preferred_element_type=jnp.float32)
    o_ref[...] = (logits + db_ref[...]).astype(o_ref.dtype)


# -----------------------------------------------------------------------------
# Parameters (pre-padded to lane multiples, weights stored in bf16)
# -----------------------------------------------------------------------------
def init_params(key, in_chans, num_features, d_embedding, n_tokens, n_classes):
    ks = jax.random.split(key, 4)
    k_patch = in_chans * PATCH * PATCH
    kp = _round_up(k_patch, LANE)
    fp = _round_up(num_features, LANE)
    dp = _round_up(d_embedding, LANE)
    vp = _round_up(n_classes + 1, LANE)

    patch_w = jax.random.normal(ks[0], (k_patch, num_features), jnp.float32) * 0.02
    ln_w = jax.random.normal(ks[1], (num_features, d_embedding), jnp.float32) * 0.02
    dec_w = jax.random.normal(ks[2], (d_embedding, n_classes + 1), jnp.float32) * 0.02
    pos = jax.random.normal(ks[3], (n_tokens, num_features), jnp.float32) * 0.02

    return {
        # encoder.patch_embed  (Conv2d(in_chans, num_features, p, stride=p))
        "patch_w": _pad2d(patch_w, kp, fp).astype(jnp.bfloat16),
        "patch_b": jnp.zeros((1, fp), jnp.float32),
        # encoder.pos_embed (per-token)
        "pos_embed": _pad2d(pos, n_tokens, fp).astype(jnp.bfloat16),
        # linear_norm = Linear(num_features, d_embedding) + LayerNorm(d_embedding)
        "ln_w": _pad2d(ln_w, fp, dp).astype(jnp.bfloat16),
        "ln_b": jnp.zeros((1, dp), jnp.float32),
        "ln_gamma": _pad2d(jnp.ones((1, d_embedding), jnp.float32), 1, dp),
        "ln_beta": jnp.zeros((1, dp), jnp.float32),
        # decoder output head stub (nb_classes + 1 vocab)
        "dec_w": _pad2d(dec_w, dp, vp).astype(jnp.bfloat16),
        "dec_b": jnp.zeros((1, vp), jnp.float32),
    }


# -----------------------------------------------------------------------------
# RecModel forward (inference: tgt / tgt_lens dropped, insert_sem=False,
# use_feat_distill only active in training).
# -----------------------------------------------------------------------------
@functools.partial(jax.jit, static_argnames=("d_embedding", "n_vocab"))
def rec_model_forward(x, params, d_embedding, n_vocab):
    """x: (B, C, H, W) NCHW image. Returns (dec_output, None, None, dec_attn_maps)."""
    B, C, H, W = x.shape
    ph, pw = H // PATCH, W // PATCH
    N = ph * pw
    M = B * N

    Kp, Fp = params["patch_w"].shape
    Dp = params["ln_w"].shape[1]
    Vp = params["dec_w"].shape[1]

    # --- patchify: conv(p, stride=p) -> (B*N, C*p*p), PyTorch weight order ---
    xp = x.reshape(B, C, ph, PATCH, pw, PATCH)
    xp = jnp.transpose(xp, (0, 2, 4, 1, 3, 5)).reshape(M, C * PATCH * PATCH)

    tm = TM
    m_pad = _round_up(M, tm)

    xp_p = jnp.zeros((m_pad, Kp), jnp.bfloat16)
    xp_p = xp_p.at[:M, :xp.shape[1]].set(xp.astype(jnp.bfloat16))

    pos_full = jnp.tile(params["pos_embed"], (B, 1))          # (B*N, Fp)
    pos_p = jnp.zeros((m_pad, Fp), jnp.bfloat16).at[:M].set(pos_full)

    out_padded = pl.pallas_call(
        functools.partial(_fused_rec_kernel, d_real=float(d_embedding)),
        out_shape=jax.ShapeDtypeStruct((m_pad, Vp), jnp.float32),
        grid_spec=pltpu.PrefetchScalarGridSpec(
            num_scalar_prefetch=0,
            grid=(m_pad // tm,),
            in_specs=[
                pl.BlockSpec((tm, Kp), lambda i: (i, 0)),   # patches (row-tiled)
                pl.BlockSpec((tm, Fp), lambda i: (i, 0)),   # pos_embed rows
                pl.BlockSpec((Kp, Fp), lambda i: (0, 0)),   # patch_w (resident)
                pl.BlockSpec((1, Fp), lambda i: (0, 0)),    # patch_b
                pl.BlockSpec((Fp, Dp), lambda i: (0, 0)),   # ln_w
                pl.BlockSpec((1, Dp), lambda i: (0, 0)),    # ln_b
                pl.BlockSpec((1, Dp), lambda i: (0, 0)),    # ln_gamma
                pl.BlockSpec((1, Dp), lambda i: (0, 0)),    # ln_beta
                pl.BlockSpec((Dp, Vp), lambda i: (0, 0)),   # dec_w
                pl.BlockSpec((1, Vp), lambda i: (0, 0)),    # dec_b
            ],
            out_specs=pl.BlockSpec((tm, Vp), lambda i: (i, 0)),
        ),
        compiler_params=pltpu.CompilerParams(
            dimension_semantics=("parallel",),      # megacore split on v7x
            vmem_limit_bytes=32 * 1024 * 1024,      # well within v5e/v6e/v7x
        ),
    )(xp_p, pos_p,
      params["patch_w"], params["patch_b"],
      params["ln_w"], params["ln_b"], params["ln_gamma"], params["ln_beta"],
      params["dec_w"], params["dec_b"])

    dec_output = out_padded[:M, :n_vocab].reshape(B, N, n_vocab)
    dec_attn_maps = None

    # inference return path of RecModel.forward
    return dec_output, None, None, dec_attn_maps


if __name__ == "__main__":
    key = jax.random.PRNGKey(0)
    k_img, k_par = jax.random.split(key)

    B, C, H, W = 2, 3, 8, 32          # small text-recognition crop
    num_features = 32                 # encoder.num_features
    d_embedding = 32                  # decoder.d_embedding
    nb_classes = 37
    n_tokens = (H // PATCH) * (W // PATCH)

    x = jax.random.normal(k_img, (B, C, H, W), jnp.float32)
    params = init_params(k_par, C, num_features, d_embedding, n_tokens,
                         nb_classes)

    dec_output, cls_logit, cls_attn, dec_attn = rec_model_forward(
        x, params, d_embedding, nb_classes + 1)
    jax.block_until_ready(dec_output)

    assert dec_output.shape == (B, n_tokens, nb_classes + 1)
    assert cls_logit is None and cls_attn is None and dec_attn is None
    assert bool(jnp.all(jnp.isfinite(dec_output)))
    print("KERNEL_OK")
</pallas_src>

<mosaic_0001>
module attributes {stable_mosaic.version = 11 : i64} {
  func.func @_fused_rec_kernel(%arg0: i32, %arg1: memref<128x128xbf16, #tpu.memory_space<vmem>>, %arg2: memref<128x128xbf16, #tpu.memory_space<vmem>>, %arg3: memref<128x128xbf16, #tpu.memory_space<vmem>>, %arg4: memref<1x128xf32, #tpu.memory_space<vmem>>, %arg5: memref<128x128xbf16, #tpu.memory_space<vmem>>, %arg6: memref<1x128xf32, #tpu.memory_space<vmem>>, %arg7: memref<1x128xf32, #tpu.memory_space<vmem>>, %arg8: memref<1x128xf32, #tpu.memory_space<vmem>>, %arg9: memref<128x128xbf16, #tpu.memory_space<vmem>>, %arg10: memref<1x128xf32, #tpu.memory_space<vmem>>, %arg11: memref<128x128xf32, #tpu.memory_space<vmem>>) attributes {dimension_semantics = [#tpu.dimension_semantics<parallel>], iteration_bounds = array<i64: 1>, scalar_prefetch = 0 : i64, scratch_operands = 0 : i64, tpu.core_type = #tpu.core_type<tc>, window_params = [{transform_indices = @transform_0, window_bounds = array<i64: 128, 128>}, {transform_indices = @transform_1, window_bounds = array<i64: 128, 128>}, {pipeline_mode = #tpu.pipeline_mode<synchronous>, transform_indices = @transform_2, window_bounds = array<i64: 128, 128>}, {pipeline_mode = #tpu.pipeline_mode<synchronous>, transform_indices = @transform_3, window_bounds = array<i64: 1, 128>}, {pipeline_mode = #tpu.pipeline_mode<synchronous>, transform_indices = @transform_4, window_bounds = array<i64: 128, 128>}, {pipeline_mode = #tpu.pipeline_mode<synchronous>, transform_indices = @transform_5, window_bounds = array<i64: 1, 128>}, {pipeline_mode = #tpu.pipeline_mode<synchronous>, transform_indices = @transform_6, window_bounds = array<i64: 1, 128>}, {pipeline_mode = #tpu.pipeline_mode<synchronous>, transform_indices = @transform_7, window_bounds = array<i64: 1, 128>}, {pipeline_mode = #tpu.pipeline_mode<synchronous>, transform_indices = @transform_8, window_bounds = array<i64: 128, 128>}, {pipeline_mode = #tpu.pipeline_mode<synchronous>, transform_indices = @transform_9, window_bounds = array<i64: 1, 128>}, {transform_indices = @transform_10, window_bounds = array<i64: 128, 128>}]} {
    %c0 = arith.constant 0 : index
    %c0_0 = arith.constant 0 : index
    %0 = vector.load %arg1[%c0, %c0_0] : memref<128x128xbf16, #tpu.memory_space<vmem>>, vector<128x128xbf16>
    %c0_1 = arith.constant 0 : index
    %c0_2 = arith.constant 0 : index
    %1 = vector.load %arg3[%c0_1, %c0_2] : memref<128x128xbf16, #tpu.memory_space<vmem>>, vector<128x128xbf16>
    %cst = arith.constant dense<0.000000e+00> : vector<128x128xf32>
    %2 = tpu.matmul %0, %1, %cst {dimension_numbers = #tpu.dot_dimension_numbers<[1], [0], [0], [1], [0, 0, 1, 1], [], []>} : vector<128x128xbf16>, vector<128x128xbf16>, vector<128x128xf32> -> vector<128x128xf32>
    %c0_3 = arith.constant 0 : index
    %c0_4 = arith.constant 0 : index
    %3 = vector.load %arg4[%c0_3, %c0_4] : memref<1x128xf32, #tpu.memory_space<vmem>>, vector<1x128xf32>
    %4 = vector.broadcast %3 : vector<1x128xf32> to vector<128x128xf32>
    %5 = arith.addf %2, %4 : vector<128x128xf32>
    %c0_5 = arith.constant 0 : index
    %c0_6 = arith.constant 0 : index
    %6 = vector.load %arg2[%c0_5, %c0_6] : memref<128x128xbf16, #tpu.memory_space<vmem>>, vector<128x128xbf16>
    %7 = arith.extf %6 : vector<128x128xbf16> to vector<128x128xf32>
    %8 = arith.addf %5, %7 : vector<128x128xf32>
    %9 = arith.truncf %8 : vector<128x128xf32> to vector<128x128xbf16>
    %c0_7 = arith.constant 0 : index
    %c0_8 = arith.constant 0 : index
    %10 = vector.load %arg5[%c0_7, %c0_8] : memref<128x128xbf16, #tpu.memory_space<vmem>>, vector<128x128xbf16>
    %cst_9 = arith.constant dense<0.000000e+00> : vector<128x128xf32>
    %11 = tpu.matmul %9, %10, %cst_9 {dimension_numbers = #tpu.dot_dimension_numbers<[1], [0], [0], [1], [0, 0, 1, 1], [], []>} : vector<128x128xbf16>, vector<128x128xbf16>, vector<128x128xf32> -> vector<128x128xf32>
    %c0_10 = arith.constant 0 : index
    %c0_11 = arith.constant 0 : index
    %12 = vector.load %arg6[%c0_10, %c0_11] : memref<1x128xf32, #tpu.memory_space<vmem>>, vector<1x128xf32>
    %13 = vector.broadcast %12 : vector<1x128xf32> to vector<128x128xf32>
    %14 = arith.addf %11, %13 : vector<128x128xf32>
    %cst_12 = arith.constant dense<0.000000e+00> : vector<128xf32>
    %15 = vector.multi_reduction <add>, %14, %cst_12 [1] : vector<128x128xf32> to vector<128xf32>
    %16 = vector.shape_cast %15 : vector<128xf32> to vector<128x1xf32>
    %cst_13 = arith.constant 3.125000e-02 : f32
    %17 = vector.broadcast %cst_13 : f32 to vector<128x1xf32>
    %18 = arith.mulf %16, %17 : vector<128x1xf32>
    %19 = arith.mulf %14, %14 : vector<128x128xf32>
    %cst_14 = arith.constant dense<0.000000e+00> : vector<128xf32>
    %20 = vector.multi_reduction <add>, %19, %cst_14 [1] : vector<128x128xf32> to vector<128xf32>
    %21 = vector.shape_cast %20 : vector<128xf32> to vector<128x1xf32>
    %cst_15 = arith.constant 3.125000e-02 : f32
    %22 = vector.broadcast %cst_15 : f32 to vector<128x1xf32>
    %23 = arith.mulf %21, %22 : vector<128x1xf32>
    %24 = arith.mulf %18, %18 : vector<128x1xf32>
    %25 = arith.subf %23, %24 : vector<128x1xf32>
    %26 = vector.broadcast %18 : vector<128x1xf32> to vector<128x128xf32>
    %27 = arith.subf %14, %26 : vector<128x128xf32>
    %cst_16 = arith.constant 9.99999974E-6 : f32
    %28 = vector.broadcast %cst_16 : f32 to vector<128x1xf32>
    %29 = arith.addf %25, %28 : vector<128x1xf32>
    %30 = math.rsqrt %29 : vector<128x1xf32>
    %31 = vector.broadcast %30 : vector<128x1xf32> to vector<128x128xf32>
    %32 = arith.mulf %27, %31 : vector<128x128xf32>
    %c0_17 = arith.constant 0 : index
    %c0_18 = arith.constant 0 : index
    %33 = vector.load %arg7[%c0_17, %c0_18] : memref<1x128xf32, #tpu.memory_space<vmem>>, vector<1x128xf32>
    %34 = vector.broadcast %33 : vector<1x128xf32> to vector<128x128xf32>
    %35 = arith.mulf %32, %34 : vector<128x128xf32>
    %c0_19 = arith.constant 0 : index
    %c0_20 = arith.constant 0 : index
    %36 = vector.load %arg8[%c0_19, %c0_20] : memref<1x128xf32, #tpu.memory_space<vmem>>, vector<1x128xf32>
    %37 = vector.broadcast %36 : vector<1x128xf32> to vector<128x128xf32>
    %38 = arith.addf %35, %37 : vector<128x128xf32>
    %39 = arith.truncf %38 : vector<128x128xf32> to vector<128x128xbf16>
    %c0_21 = arith.constant 0 : index
    %c0_22 = arith.constant 0 : index
    %40 = vector.load %arg9[%c0_21, %c0_22] : memref<128x128xbf16, #tpu.memory_space<vmem>>, vector<128x128xbf16>
    %cst_23 = arith.constant dense<0.000000e+00> : vector<128x128xf32>
    %41 = tpu.matmul %39, %40, %cst_23 {dimension_numbers = #tpu.dot_dimension_numbers<[1], [0], [0], [1], [0, 0, 1, 1], [], []>} : vector<128x128xbf16>, vector<128x128xbf16>, vector<128x128xf32> -> vector<128x128xf32>
    %c0_24 = arith.constant 0 : index
    %c0_25 = arith.constant 0 : index
    %42 = vector.load %arg10[%c0_24, %c0_25] : memref<1x128xf32, #tpu.memory_space<vmem>>, vector<1x128xf32>
    %43 = vector.broadcast %42 : vector<1x128xf32> to vector<128x128xf32>
    %44 = arith.addf %41, %43 : vector<128x128xf32>
    %c0_26 = arith.constant 0 : index
    %c0_27 = arith.constant 0 : index
    %45 = vector.load %arg11[%c0_26, %c0_27] : memref<128x128xf32, #tpu.memory_space<vmem>>, vector<128x128xf32>
    tpu.vector_store %arg11[%c0_26, %c0_27], %44 {strides = array<i32>} : memref<128x128xf32, #tpu.memory_space<vmem>>, vector<128x128xf32>,
    return
  }
  func.func @transform_0(%arg0: i32) -> (i32, i32) {
    %c0_i32 = arith.constant 0 : i32
    %c0_i32_0 = arith.constant 0 : i32
    return %arg0, %c0_i32 : i32, i32
  }
  func.func @transform_1(%arg0: i32) -> (i32, i32) {
    %c0_i32 = arith.constant 0 : i32
    %c0_i32_0 = arith.constant 0 : i32
    return %arg0, %c0_i32 : i32, i32
  }
  func.func @transform_2(%arg0: i32) -> (i32, i32) {
    %c0_i32 = arith.constant 0 : i32
    %c0_i32_0 = arith.constant 0 : i32
    %c0_i32_1 = arith.constant 0 : i32
    return %c0_i32, %c0_i32_0 : i32, i32
  }
  func.func @transform_3(%arg0: i32) -> (i32, i32) {
    %c0_i32 = arith.constant 0 : i32
    %c0_i32_0 = arith.constant 0 : i32
    %c0_i32_1 = arith.constant 0 : i32
    return %c0_i32, %c0_i32_0 : i32, i32
  }
  func.func @transform_4(%arg0: i32) -> (i32, i32) {
    %c0_i32 = arith.constant 0 : i32
    %c0_i32_0 = arith.constant 0 : i32
    %c0_i32_1 = arith.constant 0 : i32
    return %c0_i32, %c0_i32_0 : i32, i32
  }
  func.func @transform_5(%arg0: i32) -> (i32, i32) {
    %c0_i32 = arith.constant 0 : i32
    %c0_i32_0 = arith.constant 0 : i32
    %c0_i32_1 = arith.constant 0 : i32
    return %c0_i32, %c0_i32_0 : i32, i32
  }
  func.func @transform_6(%arg0: i32) -> (i32, i32) {
    %c0_i32 = arith.constant 0 : i32
    %c0_i32_0 = arith.constant 0 : i32
    %c0_i32_1 = arith.constant 0 : i32
    return %c0_i32, %c0_i32_0 : i32, i32
  }
  func.func @transform_7(%arg0: i32) -> (i32, i32) {
    %c0_i32 = arith.constant 0 : i32
    %c0_i32_0 = arith.constant 0 : i32
    %c0_i32_1 = arith.constant 0 : i32
    return %c0_i32, %c0_i32_0 : i32, i32
  }
  func.func @transform_8(%arg0: i32) -> (i32, i32) {
    %c0_i32 = arith.constant 0 : i32
    %c0_i32_0 = arith.constant 0 : i32
    %c0_i32_1 = arith.constant 0 : i32
    return %c0_i32, %c0_i32_0 : i32, i32
  }
  func.func @transform_9(%arg0: i32) -> (i32, i32) {
    %c0_i32 = arith.constant 0 : i32
    %c0_i32_0 = arith.constant 0 : i32
    %c0_i32_1 = arith.constant 0 : i32
    return %c0_i32, %c0_i32_0 : i32, i32
  }
  func.func @transform_10(%arg0: i32) -> (i32, i32) {
    %c0_i32 = arith.constant 0 : i32
    %c0_i32_0 = arith.constant 0 : i32
    return %arg0, %c0_i32 : i32, i32
  }
}

</mosaic_0001>

<llo_original>
// kernel: rec_model_forward.1
$region0: #{rec_model_forward.1}
  #allocation0 [shape = 'u32[]', space=smem, size = 0x4, offset = 0x4, fixed_abs, tag = 'smem constant byte address 0x4 - core index']
  #allocation1 [shape = 'u32[144,128]{1,0:T(1,128)}', space=vmem, size = 0x12000, scoped, tag = 'internal scratch']
  %s0 = inlined_call_operand.vmem [shape: bf16[128,128], index: 0, kind: input, shape index: {}]
  %s1 = inlined_call_operand.vmem [shape: bf16[128,128], index: 1, kind: input, shape index: {}]
  %s2 = inlined_call_operand.vmem [shape: bf16[128,128], index: 2, kind: input, shape index: {}]
  %s3 = inlined_call_operand.vmem [shape: f32[1,128], index: 3, kind: input, shape index: {}]
  %s4 = inlined_call_operand.vmem [shape: bf16[128,128], index: 4, kind: input, shape index: {}]
  %s5 = inlined_call_operand.vmem [shape: f32[1,128], index: 5, kind: input, shape index: {}]
  %s6 = inlined_call_operand.vmem [shape: f32[1,128], index: 6, kind: input, shape index: {}]
  %s7 = inlined_call_operand.vmem [shape: f32[1,128], index: 7, kind: input, shape index: {}]
  %s8 = inlined_call_operand.vmem [shape: bf16[128,128], index: 8, kind: input, shape index: {}]
  %s9 = inlined_call_operand.vmem [shape: f32[1,128], index: 9, kind: input, shape index: {}]
  %s10 = inlined_call_operand.vmem [shape: f32[128,128], index: 10, kind: output, shape index: {}]
  %s11 = sld [smem:[#allocation0]]
  $region50: #{rec_model_forward.1} parent=0
    _
  %s13 = ssub.s32 1, %s11
  %s14 = scalar_select 0, %s13, %s11
  // Predicated region
  $region2: #{rec_model_forward.1} parent=0 // pred_check
    _
  $region3: #{rec_model_forward.1} parent=0 // pred_check_branch
    %16 = sbr.rel (0) target = $region5
  $region4: #{rec_model_forward.1} parent=0 // pred_region
    _
  $region5: #{rec_model_forward.1} parent=0 // pred_fallthru
    _
  // Predicated region
  $region6: #{rec_model_forward.1} parent=0 // pred_check
    _
  $region7: #{rec_model_forward.1} parent=0 // pred_check_branch
    %18 = sbr.rel (0) target = $region9
  $region8: #{rec_model_forward.1} parent=0 // pred_region
    _
  $region9: #{rec_model_forward.1} parent=0 // pred_fallthru
    _
  // Predicated region
  $region10: #{rec_model_forward.1} parent=0 // pred_check
    _
  $region11: #{rec_model_forward.1} parent=0 // pred_check_branch
    %20 = sbr.rel (0) target = $region13
  $region12: #{rec_model_forward.1} parent=0 // pred_region
    _
  $region13: #{rec_model_forward.1} parent=0 // pred_fallthru
    _
  // Predicated region
  $region14: #{rec_model_forward.1} parent=0 // pred_check
    _
  $region15: #{rec_model_forward.1} parent=0 // pred_check_branch
    %22 = sbr.rel (0) target = $region17
  $region16: #{rec_model_forward.1} parent=0 // pred_region
    _
  $region17: #{rec_model_forward.1} parent=0 // pred_fallthru
    _
  // Predicated region
  $region18: #{rec_model_forward.1} parent=0 // pred_check
    _
  $region19: #{rec_model_forward.1} parent=0 // pred_check_branch
    %24 = sbr.rel (0) target = $region21
  $region20: #{rec_model_forward.1} parent=0 // pred_region
    _
  $region21: #{rec_model_forward.1} parent=0 // pred_fallthru
    _
  // Predicated region
  $region22: #{rec_model_forward.1} parent=0 // pred_check
    _
  $region23: #{rec_model_forward.1} parent=0 // pred_check_branch
    %26 = sbr.rel (0) target = $region25
  $region24: #{rec_model_forward.1} parent=0 // pred_region
    _
  $region25: #{rec_model_forward.1} parent=0 // pred_fallthru
    _
  // Predicated region
  $region26: #{rec_model_forward.1} parent=0 // pred_check
    _
  $region27: #{rec_model_forward.1} parent=0 // pred_check_branch
    %28 = sbr.rel (0) target = $region29
  $region28: #{rec_model_forward.1} parent=0 // pred_region
    _
  $region29: #{rec_model_forward.1} parent=0 // pred_fallthru
    _
  // Predicated region
  $region30: #{rec_model_forward.1} parent=0 // pred_check
    _
  $region31: #{rec_model_forward.1} parent=0 // pred_check_branch
    %30 = sbr.rel (0) target = $region33
  $region32: #{rec_model_forward.1} parent=0 // pred_region
    _
  $region33: #{rec_model_forward.1} parent=0 // pred_fallthru
    _
  // Predicated region
  $region34: #{rec_model_forward.1} parent=0 // pred_check
    _
  $region35: #{rec_model_forward.1} parent=0 // pred_check_branch
    %32 = sbr.rel (0) target = $region37
  $region36: #{rec_model_forward.1} parent=0 // pred_region
    _
  $region37: #{rec_model_forward.1} parent=0 // pred_fallthru
    _
  // Predicated region
  $region38: #{rec_model_forward.1} parent=0 // pred_check
    _
  $region39: #{rec_model_forward.1} parent=0 // pred_check_branch
    %34 = sbr.rel (0) target = $region41
  $region40: #{rec_model_forward.1} parent=0 // pred_region
    _
  $region41: #{rec_model_forward.1} parent=0 // pred_fallthru
    _
  %v36 = vld [vmem:[%s0] sm:$0xf]
  %v37 = vld [vmem:[%s0 + $0x4] sm:$0xf]
  %v38 = vld [vmem:[%s0 + $0x8] sm:$0xf]
  %v39 = vld [vmem:[%s0 + $0xc] sm:$0xf]
  %v40 = vld [vmem:[%s0 + $0x10] sm:$0xf]
  %v41 = vld [vmem:[%s0 + $0x14] sm:$0xf]
  %v42 = vld [vmem:[%s0 + $0x18] sm:$0xf]
  %v43 = vld [vmem:[%s0 + $0x1c] sm:$0xf]
  %v44 = vld [vmem:[%s0 + $0x20] sm:$0xf]
  %v45 = vld [vmem:[%s0 + $0x24] sm:$0xf]
  %v46 = vld [vmem:[%s0 + $0x28] sm:$0xf]
  %v47 = vld [vmem:[%s0 + $0x2c] sm:$0xf]
  %v48 = vld [vmem:[%s0 + $0x30] sm:$0xf]
  %v49 = vld [vmem:[%s0 + $0x34] sm:$0xf]
  %v50 = vld [vmem:[%s0 + $0x38] sm:$0xf]
  %v51 = vld [vmem:[%s0 + $0x3c] sm:$0xf]
  %v52 = vld [vmem:[%s2] sm:$0xf]
  %v53 = vld [vmem:[%s2 + $0x4] sm:$0xf]
  %v54 = vld [vmem:[%s2 + $0x8] sm:$0xf]
  %v55 = vld [vmem:[%s2 + $0xc] sm:$0xf]
  %v56 = vld [vmem:[%s2 + $0x10] sm:$0xf]
  %v57 = vld [vmem:[%s2 + $0x14] sm:$0xf]
  %v58 = vld [vmem:[%s2 + $0x18] sm:$0xf]
  %v59 = vld [vmem:[%s2 + $0x1c] sm:$0xf]
  %v60 = vld [vmem:[%s2 + $0x20] sm:$0xf]
  %v61 = vld [vmem:[%s2 + $0x24] sm:$0xf]
  %v62 = vld [vmem:[%s2 + $0x28] sm:$0xf]
  %v63 = vld [vmem:[%s2 + $0x2c] sm:$0xf]
  %v64 = vld [vmem:[%s2 + $0x30] sm:$0xf]
  %v65 = vld [vmem:[%s2 + $0x34] sm:$0xf]
  %v66 = vld [vmem:[%s2 + $0x38] sm:$0xf]
  %v67 = vld [vmem:[%s2 + $0x3c] sm:$0xf]
  %v68 = vld [vmem:[%s3] sm:$0x1]
  %v70 = vlaneseq
  %v71 = vshrl.u32 %v70, 7
  %v72 = vsub.s32 0, %v71
  %v73 = vrot.slane %v68, %v72
  %v91 = vunpack.c.l.b16 %v36
  %v92 = vunpack.c.l.b16 %v37
  %v93 = vunpack.c.l.b16 %v38
  %v94 = vunpack.c.l.b16 %v39
  %v95 = vunpack.c.l.b16 %v40
  %v96 = vunpack.c.l.b16 %v41
  %v97 = vunpack.c.l.b16 %v42
  %v98 = vunpack.c.l.b16 %v43
  %v99 = vunpack.c.l.b16 %v44
  %v100 = vunpack.c.l.b16 %v45
  %v101 = vunpack.c.l.b16 %v46
  %v102 = vunpack.c.l.b16 %v47
  %v103 = vunpack.c.l.b16 %v48
  %v104 = vunpack.c.l.b16 %v49
  %v105 = vunpack.c.l.b16 %v50
  %v106 = vunpack.c.l.b16 %v51
  %v107 = vpack.c.b16 %v92, %v91
  %v108 = vpack.c.b16 %v94, %v93
  %v109 = vpack.c.b16 %v96, %v95
  %v110 = vpack.c.b16 %v98, %v97
  %v111 = vpack.c.b16 %v100, %v99
  %v112 = vpack.c.b16 %v102, %v101
  %v113 = vpack.c.b16 %v104, %v103
  %v114 = vpack.c.b16 %v106, %v105
  %v139 = vunpack.c.l.b16 %v52
  %v140 = vunpack.c.l.b16 %v53
  %v141 = vunpack.c.l.b16 %v54
  %v142 = vunpack.c.l.b16 %v55
  %v143 = vunpack.c.l.b16 %v56
  %v144 = vunpack.c.l.b16 %v57
  %v145 = vunpack.c.l.b16 %v58
  %v146 = vunpack.c.l.b16 %v59
  %v147 = vunpack.c.l.b16 %v60
  %v148 = vunpack.c.l.b16 %v61
  %v149 = vunpack.c.l.b16 %v62
  %v150 = vunpack.c.l.b16 %v63
  %v151 = vunpack.c.l.b16 %v64
  %v152 = vunpack.c.l.b16 %v65
  %v153 = vunpack.c.l.b16 %v66
  %v154 = vunpack.c.l.b16 %v67
  %v155 = vpack.c.b16 %v140, %v139
  %v156 = vpack.c.b16 %v142, %v141
  %v157 = vpack.c.b16 %v144, %v143
  %v158 = vpack.c.b16 %v146, %v145
  %v159 = vpack.c.b16 %v148, %v147
  %v160 = vpack.c.b16 %v150, %v149
  %v161 = vpack.c.b16 %v152, %v151
  %v162 = vpack.c.b16 %v154, %v153
  %171 = vmatprep.subr.bf16.mxu0 0
  %172 = vmatpush1.bf16.msra.mxu0 %v155
  %173 = vmatprep.subr.bf16.mxu0 0
  %174 = vmatpush1.bf16.msra.mxu0 %v156
  %175 = vmatprep.subr.bf16.mxu0 0
  %176 = vmatpush1.bf16.msra.mxu0 %v157
  %177 = vmatprep.subr.bf16.mxu0 0
  %178 = vmatpush1.bf16.msra.mxu0 %v158
  %179 = vmatprep.subr.bf16.mxu0 0
  %180 = vmatpush1.bf16.msra.mxu0 %v159
  %181 = vmatprep.subr.bf16.mxu0 0
  %182 = vmatpush1.bf16.msra.mxu0 %v160
  %183 = vmatprep.subr.bf16.mxu0 0
  %184 = vmatpush1.bf16.msra.mxu0 %v161
  %185 = vmatprep.subr.bf16.mxu0 0
  %186 = vmatpush1.bf16.msra.mxu0 %v162
  %187 = vmatprep.subr.bf16.mxu0 0
  %188 = vmatpush1.bf16.msra.mxu0 0
  %189 = vmatprep.subr.bf16.mxu0 0
  %190 = vmatpush1.bf16.msra.mxu0 0
  %191 = vmatprep.subr.bf16.mxu0 0
  %192 = vmatpush1.bf16.msra.mxu0 0
  %193 = vmatprep.subr.bf16.mxu0 0
  %194 = vmatpush1.bf16.msra.mxu0 0
  %195 = vmatprep.subr.bf16.mxu0 0
  %196 = vmatpush1.bf16.msra.mxu0 0
  %197 = vmatprep.subr.bf16.mxu0 0
  %198 = vmatpush1.bf16.msra.mxu0 0
  %199 = vmatprep.subr.bf16.mxu0 0
  %200 = vmatpush1.bf16.msra.mxu0 0
  %201 = vmatprep.subr.bf16.mxu0 0
  %202 = vmatpush1.bf16.msra.mxu0 0
  %203 = vmatprep.mubr.bf16.mxu0 0
  %204 = vmatmul.mubr.bf16.gmra.mrb[0].mxu0 %v107
  %v205 = vpop.f32.mrb[0].mxu0
  %v206 = vadd.f32 %v73, %v205
  %v207 = vpop.f32.mrb[0].mxu0
  %v208 = vpop.f32.mrb[0].mxu0
  %v209 = vadd.f32 %v73, %v208
  %v210 = vpop.f32.mrb[0].mxu0
  %211 = vmatprep.mubr.bf16.mxu0 0
  %212 = vmatmul.mubr.bf16.gmra.mrb[0].mxu0 %v108
  %v213 = vpop.f32.mrb[0].mxu0
  %v214 = vadd.f32 %v73, %v213
  %v215 = vpop.f32.mrb[0].mxu0
  %v216 = vpop.f32.mrb[0].mxu0
  %v217 = vadd.f32 %v73, %v216
  %v218 = vpop.f32.mrb[0].mxu0
  %219 = vmatprep.mubr.bf16.mxu0 0
  %220 = vmatmul.mubr.bf16.gmra.mrb[0].mxu0 %v109
  %v221 = vpop.f32.mrb[0].mxu0
  %v222 = vadd.f32 %v73, %v221
  %v223 = vpop.f32.mrb[0].mxu0
  %v224 = vpop.f32.mrb[0].mxu0
  %v225 = vadd.f32 %v73, %v224
  %v226 = vpop.f32.mrb[0].mxu0
  %227 = vmatprep.mubr.bf16.mxu0 0
  %228 = vmatmul.mubr.bf16.gmra.mrb[0].mxu0 %v110
  %v229 = vpop.f32.mrb[0].mxu0
  %v230 = vadd.f32 %v73, %v229
  %v231 = vpop.f32.mrb[0].mxu0
  %v232 = vpop.f32.mrb[0].mxu0
  %v233 = vadd.f32 %v73, %v232
  %v234 = vpop.f32.mrb[0].mxu0
  %235 = vmatprep.mubr.bf16.mxu0 0
  %236 = vmatmul.mubr.bf16.gmra.mrb[0].mxu0 %v111
  %v237 = vpop.f32.mrb[0].mxu0
  %v238 = vadd.f32 %v73, %v237
  %v239 = vpop.f32.mrb[0].mxu0
  %v240 = vpop.f32.mrb[0].mxu0
  %v241 = vadd.f32 %v73, %v240
  %v242 = vpop.f32.mrb[0].mxu0
  %243 = vmatprep.mubr.bf16.mxu0 0
  %244 = vmatmul.mubr.bf16.gmra.mrb[0].mxu0 %v112
  %v245 = vpop.f32.mrb[0].mxu0
  %v246 = vadd.f32 %v73, %v245
  %v247 = vpop.f32.mrb[0].mxu0
  %v248 = vpop.f32.mrb[0].mxu0
  %v249 = vadd.f32 %v73, %v248
  %v250 = vpop.f32.mrb[0].mxu0
  %251 = vmatprep.mubr.bf16.mxu0 0
  %252 = vmatmul.mubr.bf16.gmra.mrb[0].mxu0 %v113
  %v253 = vpop.f32.mrb[0].mxu0
  %v254 = vadd.f32 %v73, %v253
  %v255 = vpop.f32.mrb[0].mxu0
  %v256 = vpop.f32.mrb[0].mxu0
  %v257 = vadd.f32 %v73, %v256
  %v258 = vpop.f32.mrb[0].mxu0
  %259 = vmatprep.mubr.bf16.mxu0 0
  %260 = vmatmul.mubr.bf16.gmra.mrb[0].mxu0 %v114
  %v261 = vpop.f32.mrb[0].mxu0
  %v262 = vadd.f32 %v73, %v261
  %v263 = vpop.f32.mrb[0].mxu0
  %v264 = vpop.f32.mrb[0].mxu0
  %v265 = vadd.f32 %v73, %v264
  %v266 = vpop.f32.mrb[0].mxu0
  %267 = vdwg.mxu0
  %v268 = vld [vmem:[%s1] sm:$0xf]
  %v269 = vld [vmem:[%s1 + $0x4] sm:$0xf]
  %v270 = vld [vmem:[%s1 + $0x8] sm:$0xf]
  %v271 = vld [vmem:[%s1 + $0xc] sm:$0xf]
  %v272 = vld [vmem:[%s1 + $0x10] sm:$0xf]
  %v273 = vld [vmem:[%s1 + $0x14] sm:$0xf]
  %v274 = vld [vmem:[%s1 + $0x18] sm:$0xf]
  %v275 = vld [vmem:[%s1 + $0x1c] sm:$0xf]
  %v276 = vld [vmem:[%s1 + $0x20] sm:$0xf]
  %v277 = vld [vmem:[%s1 + $0x24] sm:$0xf]
  %v278 = vld [vmem:[%s1 + $0x28] sm:$0xf]
  %v279 = vld [vmem:[%s1 + $0x2c] sm:$0xf]
  %v280 = vld [vmem:[%s1 + $0x30] sm:$0xf]
  %v281 = vld [vmem:[%s1 + $0x34] sm:$0xf]
  %v282 = vld [vmem:[%s1 + $0x38] sm:$0xf]
  %v283 = vld [vmem:[%s1 + $0x3c] sm:$0xf]
  %v284 = vunpack.c.l.bf16 %v268
  %v285 = vunpack.c.l.bf16 %v269
  %v286 = vunpack.c.l.bf16 %v270
  %v287 = vunpack.c.l.bf16 %v271
  %v288 = vunpack.c.l.bf16 %v272
  %v289 = vunpack.c.l.bf16 %v273
  %v290 = vunpack.c.l.bf16 %v274
  %v291 = vunpack.c.l.bf16 %v275
  %v292 = vunpack.c.l.bf16 %v276
  %v293 = vunpack.c.l.bf16 %v277
  %v294 = vunpack.c.l.bf16 %v278
  %v295 = vunpack.c.l.bf16 %v279
  %v296 = vunpack.c.l.bf16 %v280
  %v297 = vunpack.c.l.bf16 %v281
  %v298 = vunpack.c.l.bf16 %v282
  %v299 = vunpack.c.l.bf16 %v283
  %v300 = vadd.f32 %v206, %v284
  %v301 = vadd.f32 %v209, %v285
  %v302 = vadd.f32 %v214, %v286
  %v303 = vadd.f32 %v217, %v287
  %v304 = vadd.f32 %v222, %v288
  %v305 = vadd.f32 %v225, %v289
  %v306 = vadd.f32 %v230, %v290
  %v307 = vadd.f32 %v233, %v291
  %v308 = vadd.f32 %v238, %v292
  %v309 = vadd.f32 %v241, %v293
  %v310 = vadd.f32 %v246, %v294
  %v311 = vadd.f32 %v249, %v295
  %v312 = vadd.f32 %v254, %v296
  %v313 = vadd.f32 %v257, %v297
  %v314 = vadd.f32 %v262, %v298
  %v315 = vadd.f32 %v265, %v299
  %v316 = vpack.c.bf16 %v301, %v300
  %v317 = vpack.c.bf16 %v303, %v302
  %v318 = vpack.c.bf16 %v305, %v304
  %v319 = vpack.c.bf16 %v307, %v306
  %v320 = vpack.c.bf16 %v309, %v308
  %v321 = vpack.c.bf16 %v311, %v310
  %v322 = vpack.c.bf16 %v313, %v312
  %v323 = vpack.c.bf16 %v315, %v314
  %v324 = vld [vmem:[%s4] sm:$0xf]
  %v325 = vld [vmem:[%s4 + $0x4] sm:$0xf]
  %v326 = vld [vmem:[%s4 + $0x8] sm:$0xf]
  %v327 = vld [vmem:[%s4 + $0xc] sm:$0xf]
  %v328 = vld [vmem:[%s4 + $0x10] sm:$0xf]
  %v329 = vld [vmem:[%s4 + $0x14] sm:$0xf]
  %v330 = vld [vmem:[%s4 + $0x18] sm:$0xf]
  %v331 = vld [vmem:[%s4 + $0x1c] sm:$0xf]
  %v332 = vld [vmem:[%s4 + $0x20] sm:$0xf]
  %v333 = vld [vmem:[%s4 + $0x24] sm:$0xf]
  %v334 = vld [vmem:[%s4 + $0x28] sm:$0xf]
  %v335 = vld [vmem:[%s4 + $0x2c] sm:$0xf]
  %v336 = vld [vmem:[%s4 + $0x30] sm:$0xf]
  %v337 = vld [vmem:[%s4 + $0x34] sm:$0xf]
  %v338 = vld [vmem:[%s4 + $0x38] sm:$0xf]
  %v339 = vld [vmem:[%s4 + $0x3c] sm:$0xf]
  %v340 = vld [vmem:[%s5] sm:$0x1]
  %v342 = vlaneseq
  %v343 = vshrl.u32 %v342, 7
  %v344 = vsub.s32 0, %v343
  %v345 = vrot.slane %v340, %v344
  %v363 = vunpack.c.l.b16 %v324
  %v364 = vunpack.c.l.b16 %v325
  %v365 = vunpack.c.l.b16 %v326
  %v366 = vunpack.c.l.b16 %v327
  %v367 = vunpack.c.l.b16 %v328
  %v368 = vunpack.c.l.b16 %v329
  %v369 = vunpack.c.l.b16 %v330
  %v370 = vunpack.c.l.b16 %v331
  %v371 = vunpack.c.l.b16 %v332
  %v372 = vunpack.c.l.b16 %v333
  %v373 = vunpack.c.l.b16 %v334
  %v374 = vunpack.c.l.b16 %v335
  %v375 = vunpack.c.l.b16 %v336
  %v376 = vunpack.c.l.b16 %v337
  %v377 = vunpack.c.l.b16 %v338
  %v378 = vunpack.c.l.b16 %v339
  %v379 = vpack.c.b16 %v364, %v363
  %v380 = vpack.c.b16 %v366, %v365
  %v381 = vpack.c.b16 %v368, %v367
  %v382 = vpack.c.b16 %v370, %v369
  %v383 = vpack.c.b16 %v372, %v371
  %v384 = vpack.c.b16 %v374, %v373
  %v385 = vpack.c.b16 %v376, %v375
  %v386 = vpack.c.b16 %v378, %v377
  %395 = vmatprep.subr.bf16.mxu0 0
  %396 = vmatpush1.bf16.msra.mxu0 %v379
  %397 = vmatprep.subr.bf16.mxu0 0
  %398 = vmatpush1.bf16.msra.mxu0 %v380
  %399 = vmatprep.subr.bf16.mxu0 0
  %400 = vmatpush1.bf16.msra.mxu0 %v381
  %401 = vmatprep.subr.bf16.mxu0 0
  %402 = vmatpush1.bf16.msra.mxu0 %v382
  %403 = vmatprep.subr.bf16.mxu0 0
  %404 = vmatpush1.bf16.msra.mxu0 %v383
  %405 = vmatprep.subr.bf16.mxu0 0
  %406 = vmatpush1.bf16.msra.mxu0 %v384
  %407 = vmatprep.subr.bf16.mxu0 0
  %408 = vmatpush1.bf16.msra.mxu0 %v385
  %409 = vmatprep.subr.bf16.mxu0 0
  %410 = vmatpush1.bf16.msra.mxu0 %v386
  %411 = vmatprep.subr.bf16.mxu0 0
  %412 = vmatpush1.bf16.msra.mxu0 0
  %413 = vmatprep.subr.bf16.mxu0 0
  %414 = vmatpush1.bf16.msra.mxu0 0
  %415 = vmatprep.subr.bf16.mxu0 0
  %416 = vmatpush1.bf16.msra.mxu0 0
  %417 = vmatprep.subr.bf16.mxu0 0
  %418 = vmatpush1.bf16.msra.mxu0 0
  %419 = vmatprep.subr.bf16.mxu0 0
  %420 = vmatpush1.bf16.msra.mxu0 0
  %421 = vmatprep.subr.bf16.mxu0 0
  %422 = vmatpush1.bf16.msra.mxu0 0
  %423 = vmatprep.subr.bf16.mxu0 0
  %424 = vmatpush1.bf16.msra.mxu0 0
  %425 = vmatprep.subr.bf16.mxu0 0
  %426 = vmatpush1.bf16.msra.mxu0 0
  %427 = vmatprep.mubr.bf16.mxu0 0
  %428 = vmatmul.mubr.bf16.gmra.mrb[0].mxu0 %v316
  %v429 = vpop.f32.mrb[0].mxu0
  %v430 = vadd.f32 %v345, %v429
  %v431 = vpop.f32.mrb[0].mxu0
  %v432 = vpop.f32.mrb[0].mxu0
  %v433 = vadd.f32 %v345, %v432
  %v434 = vpop.f32.mrb[0].mxu0
  %435 = vmatprep.mubr.bf16.mxu0 0
  %436 = vmatmul.mubr.bf16.gmra.mrb[0].mxu0 %v317
  %v437 = vpop.f32.mrb[0].mxu0
  %v438 = vadd.f32 %v345, %v437
  %v439 = vpop.f32.mrb[0].mxu0
  %v440 = vpop.f32.mrb[0].mxu0
  %v441 = vadd.f32 %v345, %v440
  %v442 = vpop.f32.mrb[0].mxu0
  %443 = vmatprep.mubr.bf16.mxu0 0
  %444 = vmatmul.mubr.bf16.gmra.mrb[0].mxu0 %v318
  %v445 = vpop.f32.mrb[0].mxu0
  %v446 = vadd.f32 %v345, %v445
  %v447 = vpop.f32.mrb[0].mxu0
  %v448 = vpop.f32.mrb[0].mxu0
  %v449 = vadd.f32 %v345, %v448
  %v450 = vpop.f32.mrb[0].mxu0
  %451 = vmatprep.mubr.bf16.mxu0 0
  %452 = vmatmul.mubr.bf16.gmra.mrb[0].mxu0 %v319
  %v453 = vpop.f32.mrb[0].mxu0
  %v454 = vadd.f32 %v345, %v453
  %v455 = vpop.f32.mrb[0].mxu0
  %v456 = vpop.f32.mrb[0].mxu0
  %v457 = vadd.f32 %v345, %v456
  %v458 = vpop.f32.mrb[0].mxu0
  %459 = vmatprep.mubr.bf16.mxu0 0
  %460 = vmatmul.mubr.bf16.gmra.mrb[0].mxu0 %v320
  %v461 = vpop.f32.mrb[0].mxu0
  %v462 = vadd.f32 %v345, %v461
  %v463 = vpop.f32.mrb[0].mxu0
  %v464 = vpop.f32.mrb[0].mxu0
  %v465 = vadd.f32 %v345, %v464
  %v466 = vpop.f32.mrb[0].mxu0
  %467 = vmatprep.mubr.bf16.mxu0 0
  %468 = vmatmul.mubr.bf16.gmra.mrb[0].mxu0 %v321
  %v469 = vpop.f32.mrb[0].mxu0
  %v470 = vadd.f32 %v345, %v469
  %v471 = vpop.f32.mrb[0].mxu0
  %v472 = vpop.f32.mrb[0].mxu0
  %v473 = vadd.f32 %v345, %v472
  %v474 = vpop.f32.mrb[0].mxu0
  %475 = vmatprep.mubr.bf16.mxu0 0
  %476 = vmatmul.mubr.bf16.gmra.mrb[0].mxu0 %v322
  %v477 = vpop.f32.mrb[0].mxu0
  %v478 = vadd.f32 %v345, %v477
  %v479 = vpop.f32.mrb[0].mxu0
  %v480 = vpop.f32.mrb[0].mxu0
  %v481 = vadd.f32 %v345, %v480
  %v482 = vpop.f32.mrb[0].mxu0
  %483 = vmatprep.mubr.bf16.mxu0 0
  %484 = vmatmul.mubr.bf16.gmra.mrb[0].mxu0 %v323
  %v485 = vpop.f32.mrb[0].mxu0
  %v486 = vadd.f32 %v345, %v485
  %v487 = vpop.f32.mrb[0].mxu0
  %v488 = vpop.f32.mrb[0].mxu0
  %v489 = vadd.f32 %v345, %v488
  %v490 = vpop.f32.mrb[0].mxu0
  %491 = vdwg.mxu0
  %492 = vadd.xlane.f32.xlu0 %v430
  %v493 = vpop.xlane.xlu0 %492
  %494 = vadd.xlane.f32.xlu0 %v433
  %v495 = vpop.xlane.xlu0 %494
  %496 = vadd.xlane.f32.xlu0 %v438
  %v497 = vpop.xlane.xlu0 %496
  %498 = vadd.xlane.f32.xlu0 %v441
  %v499 = vpop.xlane.xlu0 %498
  %500 = vadd.xlane.f32.xlu0 %v446
  %v501 = vpop.xlane.xlu0 %500
  %502 = vadd.xlane.f32.xlu0 %v449
  %v503 = vpop.xlane.xlu0 %502
  %504 = vadd.xlane.f32.xlu0 %v454
  %v505 = vpop.xlane.xlu0 %504
  %506 = vadd.xlane.f32.xlu0 %v457
  %v507 = vpop.xlane.xlu0 %506
  %508 = vadd.xlane.f32.xlu0 %v462
  %v509 = vpop.xlane.xlu0 %508
  %510 = vadd.xlane.f32.xlu0 %v465
  %v511 = vpop.xlane.xlu0 %510
  %512 = vadd.xlane.f32.xlu0 %v470
  %v513 = vpop.xlane.xlu0 %512
  %514 = vadd.xlane.f32.xlu0 %v473
  %v515 = vpop.xlane.xlu0 %514
  %516 = vadd.xlane.f32.xlu0 %v478
  %v517 = vpop.xlane.xlu0 %516
  %518 = vadd.xlane.f32.xlu0 %v481
  %v519 = vpop.xlane.xlu0 %518
  %520 = vadd.xlane.f32.xlu0 %v486
  %v521 = vpop.xlane.xlu0 %520
  %522 = vadd.xlane.f32.xlu0 %v489
  %v523 = vpop.xlane.xlu0 %522
  %v524 = vmul.f32 %v493, 0.03125
  %v525 = vmul.f32 %v495, 0.03125
  %v526 = vmul.f32 %v497, 0.03125
  %v527 = vmul.f32 %v499, 0.03125
  %v528 = vmul.f32 %v501, 0.03125
  %v529 = vmul.f32 %v503, 0.03125
  %v530 = vmul.f32 %v505, 0.03125
  %v531 = vmul.f32 %v507, 0.03125
  %v532 = vmul.f32 %v509, 0.03125
  %v533 = vmul.f32 %v511, 0.03125
  %v534 = vmul.f32 %v513, 0.03125
  %v535 = vmul.f32 %v515, 0.03125
  %v536 = vmul.f32 %v517, 0.03125
  %v537 = vmul.f32 %v519, 0.03125
  %v538 = vmul.f32 %v521, 0.03125
  %v539 = vmul.f32 %v523, 0.03125
  %v540 = vmul.f32 %v430, %v430
  %v541 = vmul.f32 %v433, %v433
  %v542 = vmul.f32 %v438, %v438
  %v543 = vmul.f32 %v441, %v441
  %v544 = vmul.f32 %v446, %v446
  %v545 = vmul.f32 %v449, %v449
  %v546 = vmul.f32 %v454, %v454
  %v547 = vmul.f32 %v457, %v457
  %v548 = vmul.f32 %v462, %v462
  %v549 = vmul.f32 %v465, %v465
  %v550 = vmul.f32 %v470, %v470
  %v551 = vmul.f32 %v473, %v473
  %v552 = vmul.f32 %v478, %v478
  %v553 = vmul.f32 %v481, %v481
  %v554 = vmul.f32 %v486, %v486
  %v555 = vmul.f32 %v489, %v489
  %556 = vadd.xlane.f32.xlu0 %v540
  %v557 = vpop.xlane.xlu0 %556
  %558 = vadd.xlane.f32.xlu0 %v541
  %v559 = vpop.xlane.xlu0 %558
  %560 = vadd.xlane.f32.xlu0 %v542
  %v561 = vpop.xlane.xlu0 %560
  %562 = vadd.xlane.f32.xlu0 %v543
  %v563 = vpop.xlane.xlu0 %562
  %564 = vadd.xlane.f32.xlu0 %v544
  %v565 = vpop.xlane.xlu0 %564
  %566 = vadd.xlane.f32.xlu0 %v545
  %v567 = vpop.xlane.xlu0 %566
  %568 = vadd.xlane.f32.xlu0 %v546
  %v569 = vpop.xlane.xlu0 %568
  %570 = vadd.xlane.f32.xlu0 %v547
  %v571 = vpop.xlane.xlu0 %570
  %572 = vadd.xlane.f32.xlu0 %v548
  %v573 = vpop.xlane.xlu0 %572
  %574 = vadd.xlane.f32.xlu0 %v549
  %v575 = vpop.xlane.xlu0 %574
  %576 = vadd.xlane.f32.xlu0 %v550
  %v577 = vpop.xlane.xlu0 %576
  %578 = vadd.xlane.f32.xlu0 %v551
  %v579 = vpop.xlane.xlu0 %578
  %580 = vadd.xlane.f32.xlu0 %v552
  %v581 = vpop.xlane.xlu0 %580
  %582 = vadd.xlane.f32.xlu0 %v553
  %v583 = vpop.xlane.xlu0 %582
  %584 = vadd.xlane.f32.xlu0 %v554
  %v585 = vpop.xlane.xlu0 %584
  %586 = vadd.xlane.f32.xlu0 %v555
  %v587 = vpop.xlane.xlu0 %586
  %v588 = vmul.f32 %v557, 0.03125
  %v589 = vmul.f32 %v559, 0.03125
  %v590 = vmul.f32 %v561, 0.03125
  %v591 = vmul.f32 %v563, 0.03125
  %v592 = vmul.f32 %v565, 0.03125
  %v593 = vmul.f32 %v567, 0.03125
  %v594 = vmul.f32 %v569, 0.03125
  %v595 = vmul.f32 %v571, 0.03125
  %v596 = vmul.f32 %v573, 0.03125
  %v597 = vmul.f32 %v575, 0.03125
  %v598 = vmul.f32 %v577, 0.03125
  %v599 = vmul.f32 %v579, 0.03125
  %v600 = vmul.f32 %v581, 0.03125
  %v601 = vmul.f32 %v583, 0.03125
  %v602 = vmul.f32 %v585, 0.03125
  %v603 = vmul.f32 %v587, 0.03125
  %v604 = vmul.f32 %v524, %v524
  %v605 = vmul.f32 %v525, %v525
  %v606 = vmul.f32 %v526, %v526
  %v607 = vmul.f32 %v527, %v527
  %v608 = vmul.f32 %v528, %v528
  %v609 = vmul.f32 %v529, %v529
  %v610 = vmul.f32 %v530, %v530
  %v611 = vmul.f32 %v531, %v531
  %v612 = vmul.f32 %v532, %v532
  %v613 = vmul.f32 %v533, %v533
  %v614 = vmul.f32 %v534, %v534
  %v615 = vmul.f32 %v535, %v535
  %v616 = vmul.f32 %v536, %v536
  %v617 = vmul.f32 %v537, %v537
  %v618 = vmul.f32 %v538, %v538
  %v619 = vmul.f32 %v539, %v539
  %v620 = vsub.f32 %v588, %v604
  %v621 = vsub.f32 %v589, %v605
  %v622 = vsub.f32 %v590, %v606
  %v623 = vsub.f32 %v591, %v607
  %v624 = vsub.f32 %v592, %v608
  %v625 = vsub.f32 %v593, %v609
  %v626 = vsub.f32 %v594, %v610
  %v627 = vsub.f32 %v595, %v611
  %v628 = vsub.f32 %v596, %v612
  %v629 = vsub.f32 %v597, %v613
  %v630 = vsub.f32 %v598, %v614
  %v631 = vsub.f32 %v599, %v615
  %v632 = vsub.f32 %v600, %v616
  %v633 = vsub.f32 %v601, %v617
  %v634 = vsub.f32 %v602, %v618
  %v635 = vsub.f32 %v603, %v619
  %v636 = vsub.f32 %v430, %v524
  %v637 = vsub.f32 %v433, %v525
  %v638 = vsub.f32 %v438, %v526
  %v639 = vsub.f32 %v441, %v527
  %v640 = vsub.f32 %v446, %v528
  %v641 = vsub.f32 %v449, %v529
  %v642 = vsub.f32 %v454, %v530
  %v643 = vsub.f32 %v457, %v531
  %v644 = vsub.f32 %v462, %v532
  %v645 = vsub.f32 %v465, %v533
  %v646 = vsub.f32 %v470, %v534
  %v647 = vsub.f32 %v473, %v535
  %v648 = vsub.f32 %v478, %v536
  %v649 = vsub.f32 %v481, %v537
  %v650 = vsub.f32 %v486, %v538
  %v651 = vsub.f32 %v489, %v539
  %v652 = vadd.f32 %v620, 1e-05
  %v653 = vadd.f32 %v621, 1e-05
  %v654 = vadd.f32 %v622, 1e-05
  %v655 = vadd.f32 %v623, 1e-05
  %v656 = vadd.f32 %v624, 1e-05
  %v657 = vadd.f32 %v625, 1e-05
  %v658 = vadd.f32 %v626, 1e-05
  %v659 = vadd.f32 %v627, 1e-05
  %v660 = vadd.f32 %v628, 1e-05
  %v661 = vadd.f32 %v629, 1e-05
  %v662 = vadd.f32 %v630, 1e-05
  %v663 = vadd.f32 %v631, 1e-05
  %v664 = vadd.f32 %v632, 1e-05
  %v665 = vadd.f32 %v633, 1e-05
  %v666 = vadd.f32 %v634, 1e-05
  %v667 = vadd.f32 %v635, 1e-05
  %v668 = vrsqrt.pop %v652
  %v669 = vrsqrt.pop %v653
  %v670 = vrsqrt.pop %v654
  %v671 = vrsqrt.pop %v655
  %v672 = vrsqrt.pop %v656
  %v673 = vrsqrt.pop %v657
  %v674 = vrsqrt.pop %v658
  %v675 = vrsqrt.pop %v659
  %v676 = vrsqrt.pop %v660
  %v677 = vrsqrt.pop %v661
  %v678 = vrsqrt.pop %v662
  %v679 = vrsqrt.pop %v663
  %v680 = vrsqrt.pop %v664
  %v681 = vrsqrt.pop %v665
  %v682 = vrsqrt.pop %v666
  %v683 = vrsqrt.pop %v667
  %v684 = vmul.f32 %v636, %v668
  %v685 = vmul.f32 %v637, %v669
  %v686 = vmul.f32 %v638, %v670
  %v687 = vmul.f32 %v639, %v671
  %v688 = vmul.f32 %v640, %v672
  %v689 = vmul.f32 %v641, %v673
  %v690 = vmul.f32 %v642, %v674
  %v691 = vmul.f32 %v643, %v675
  %v692 = vmul.f32 %v644, %v676
  %v693 = vmul.f32 %v645, %v677
  %v694 = vmul.f32 %v646, %v678
  %v695 = vmul.f32 %v647, %v679
  %v696 = vmul.f32 %v648, %v680
  %v697 = vmul.f32 %v649, %v681
  %v698 = vmul.f32 %v650, %v682
  %v699 = vmul.f32 %v651, %v683
  %v700 = vld [vmem:[%s6] sm:$0x1]
  %v702 = vlaneseq
  %v703 = vshrl.u32 %v702, 7
  %v704 = vsub.s32 0, %v703
  %v705 = vrot.slane %v700, %v704
  %v707 = vmul.f32 %v684, %v705
  %v708 = vmul.f32 %v685, %v705
  %v709 = vmul.f32 %v686, %v705
  %v710 = vmul.f32 %v687, %v705
  %v711 = vmul.f32 %v688, %v705
  %v712 = vmul.f32 %v689, %v705
  %v713 = vmul.f32 %v690, %v705
  %v714 = vmul.f32 %v691, %v705
  %v715 = vmul.f32 %v692, %v705
  %v716 = vmul.f32 %v693, %v705
  %v717 = vmul.f32 %v694, %v705
  %v718 = vmul.f32 %v695, %v705
  %v719 = vmul.f32 %v696, %v705
  %v720 = vmul.f32 %v697, %v705
  %v721 = vmul.f32 %v698, %v705
  %v722 = vmul.f32 %v699, %v705
  %v723 = vld [vmem:[%s7] sm:$0x1]
  %v725 = vlaneseq
  %v726 = vshrl.u32 %v725, 7
  %v727 = vsub.s32 0, %v726
  %v728 = vrot.slane %v723, %v727
  %v730 = vadd.f32 %v707, %v728
  %v731 = vadd.f32 %v708, %v728
  %v732 = vadd.f32 %v709, %v728
  %v733 = vadd.f32 %v710, %v728
  %v734 = vadd.f32 %v711, %v728
  %v735 = vadd.f32 %v712, %v728
  %v736 = vadd.f32 %v713, %v728
  %v737 = vadd.f32 %v714, %v728
  %v738 = vadd.f32 %v715, %v728
  %v739 = vadd.f32 %v716, %v728
  %v740 = vadd.f32 %v717, %v728
  %v741 = vadd.f32 %v718, %v728
  %v742 = vadd.f32 %v719, %v728
  %v743 = vadd.f32 %v720, %v728
  %v744 = vadd.f32 %v721, %v728
  %v745 = vadd.f32 %v722, %v728
  %v746 = vpack.c.bf16 %v731, %v730
  %v747 = vpack.c.bf16 %v733, %v732
  %v748 = vpack.c.bf16 %v735, %v734
  %v749 = vpack.c.bf16 %v737, %v736
  %v750 = vpack.c.bf16 %v739, %v738
  %v751 = vpack.c.bf16 %v741, %v740
  %v752 = vpack.c.bf16 %v743, %v742
  %v753 = vpack.c.bf16 %v745, %v744
  %v754 = vld [vmem:[%s8] sm:$0xf]
  %v755 = vld [vmem:[%s8 + $0x4] sm:$0xf]
  %v756 = vld [vmem:[%s8 + $0x8] sm:$0xf]
  %v757 = vld [vmem:[%s8 + $0xc] sm:$0xf]
  %v758 = vld [vmem:[%s8 + $0x10] sm:$0xf]
  %v759 = vld [vmem:[%s8 + $0x14] sm:$0xf]
  %v760 = vld [vmem:[%s8 + $0x18] sm:$0xf]
  %v761 = vld [vmem:[%s8 + $0x1c] sm:$0xf]
  %v762 = vld [vmem:[%s8 + $0x20] sm:$0xf]
  %v763 = vld [vmem:[%s8 + $0x24] sm:$0xf]
  %v764 = vld [vmem:[%s8 + $0x28] sm:$0xf]
  %v765 = vld [vmem:[%s8 + $0x2c] sm:$0xf]
  %v766 = vld [vmem:[%s8 + $0x30] sm:$0xf]
  %v767 = vld [vmem:[%s8 + $0x34] sm:$0xf]
  %v768 = vld [vmem:[%s8 + $0x38] sm:$0xf]
  %v769 = vld [vmem:[%s8 + $0x3c] sm:$0xf]
  %v770 = vld [vmem:[%s9] sm:$0x1]
  %v772 = vlaneseq
  %v773 = vshrl.u32 %v772, 7
  %v774 = vsub.s32 0, %v773
  %v775 = vrot.slane %v770, %v774
  %v793 = vunpack.c.l.b16 %v754
  %v794 = vunpack.c.l.b16 %v755
  %v795 = vunpack.c.l.b16 %v756
  %v796 = vunpack.c.l.b16 %v757
  %v797 = vunpack.c.l.b16 %v758
  %v798 = vunpack.c.l.b16 %v759
  %v799 = vunpack.c.l.b16 %v760
  %v800 = vunpack.c.l.b16 %v761
  %v801 = vunpack.c.l.b16 %v762
  %v802 = vunpack.c.l.b16 %v763
  %v803 = vunpack.c.l.b16 %v764
  %v804 = vunpack.c.l.b16 %v765
  %v805 = vunpack.c.l.b16 %v766
  %v806 = vunpack.c.l.b16 %v767
  %v807 = vunpack.c.l.b16 %v768
  %v808 = vunpack.c.l.b16 %v769
  %v809 = vpack.c.b16 %v794, %v793
  %v810 = vpack.c.b16 %v796, %v795
  %v811 = vpack.c.b16 %v798, %v797
  %v812 = vpack.c.b16 %v800, %v799
  %v813 = vpack.c.b16 %v802, %v801
  %v814 = vpack.c.b16 %v804, %v803
  %v815 = vpack.c.b16 %v806, %v805
  %v816 = vpack.c.b16 %v808, %v807
  %825 = vmatprep.subr.bf16.mxu0 0
  %826 = vmatpush1.bf16.msra.mxu0 %v809
  %827 = vmatprep.subr.bf16.mxu0 0
  %828 = vmatpush1.bf16.msra.mxu0 %v810
  %829 = vmatprep.subr.bf16.mxu0 0
  %830 = vmatpush1.bf16.msra.mxu0 %v811
  %831 = vmatprep.subr.bf16.mxu0 0
  %832 = vmatpush1.bf16.msra.mxu0 %v812
  %833 = vmatprep.subr.bf16.mxu0 0
  %834 = vmatpush1.bf16.msra.mxu0 %v813
  %835 = vmatprep.subr.bf16.mxu0 0
  %836 = vmatpush1.bf16.msra.mxu0 %v814
  %837 = vmatprep.subr.bf16.mxu0 0
  %838 = vmatpush1.bf16.msra.mxu0 %v815
  %839 = vmatprep.subr.bf16.mxu0 0
  %840 = vmatpush1.bf16.msra.mxu0 %v816
  %841 = vmatprep.subr.bf16.mxu0 0
  %842 = vmatpush1.bf16.msra.mxu0 0
  %843 = vmatprep.subr.bf16.mxu0 0
  %844 = vmatpush1.bf16.msra.mxu0 0
  %845 = vmatprep.subr.bf16.mxu0 0
  %846 = vmatpush1.bf16.msra.mxu0 0
  %847 = vmatprep.subr.bf16.mxu0 0
  %848 = vmatpush1.bf16.msra.mxu0 0
  %849 = vmatprep.subr.bf16.mxu0 0
  %850 = vmatpush1.bf16.msra.mxu0 0
  %851 = vmatprep.subr.bf16.mxu0 0
  %852 = vmatpush1.bf16.msra.mxu0 0
  %853 = vmatprep.subr.bf16.mxu0 0
  %854 = vmatpush1.bf16.msra.mxu0 0
  %855 = vmatprep.subr.bf16.mxu0 0
  %856 = vmatpush1.bf16.msra.mxu0 0
  %857 = vmatprep.mubr.bf16.mxu0 0
  %858 = vmatmul.mubr.bf16.gmra.mrb[0].mxu0 %v746
  %v859 = vpop.f32.mrb[0].mxu0
  %v860 = vadd.f32 %v775, %v859
  %v861 = vpop.f32.mrb[0].mxu0
  %v862 = vpop.f32.mrb[0].mxu0
  %v863 = vadd.f32 %v775, %v862
  %v864 = vpop.f32.mrb[0].mxu0
  %865 = vmatprep.mubr.bf16.mxu0 0
  %866 = vmatmul.mubr.bf16.gmra.mrb[0].mxu0 %v747
  %v867 = vpop.f32.mrb[0].mxu0
  %v868 = vadd.f32 %v775, %v867
  %v869 = vpop.f32.mrb[0].mxu0
  %v870 = vpop.f32.mrb[0].mxu0
  %v871 = vadd.f32 %v775, %v870
  %v872 = vpop.f32.mrb[0].mxu0
  %873 = vmatprep.mubr.bf16.mxu0 0
  %874 = vmatmul.mubr.bf16.gmra.mrb[0].mxu0 %v748
  %v875 = vpop.f32.mrb[0].mxu0
  %v876 = vadd.f32 %v775, %v875
  %v877 = vpop.f32.mrb[0].mxu0
  %v878 = vpop.f32.mrb[0].mxu0
  %v879 = vadd.f32 %v775, %v878
  %v880 = vpop.f32.mrb[0].mxu0
  %881 = vmatprep.mubr.bf16.mxu0 0
  %882 = vmatmul.mubr.bf16.gmra.mrb[0].mxu0 %v749
  %v883 = vpop.f32.mrb[0].mxu0
  %v884 = vadd.f32 %v775, %v883
  %v885 = vpop.f32.mrb[0].mxu0
  %v886 = vpop.f32.mrb[0].mxu0
  %v887 = vadd.f32 %v775, %v886
  %v888 = vpop.f32.mrb[0].mxu0
  %889 = vmatprep.mubr.bf16.mxu0 0
  %890 = vmatmul.mubr.bf16.gmra.mrb[0].mxu0 %v750
  %v891 = vpop.f32.mrb[0].mxu0
  %v892 = vadd.f32 %v775, %v891
  %v893 = vpop.f32.mrb[0].mxu0
  %v894 = vpop.f32.mrb[0].mxu0
  %v895 = vadd.f32 %v775, %v894
  %v896 = vpop.f32.mrb[0].mxu0
  %897 = vmatprep.mubr.bf16.mxu0 0
  %898 = vmatmul.mubr.bf16.gmra.mrb[0].mxu0 %v751
  %v899 = vpop.f32.mrb[0].mxu0
  %v900 = vadd.f32 %v775, %v899
  %v901 = vpop.f32.mrb[0].mxu0
  %v902 = vpop.f32.mrb[0].mxu0
  %v903 = vadd.f32 %v775, %v902
  %v904 = vpop.f32.mrb[0].mxu0
  %905 = vmatprep.mubr.bf16.mxu0 0
  %906 = vmatmul.mubr.bf16.gmra.mrb[0].mxu0 %v752
  %v907 = vpop.f32.mrb[0].mxu0
  %v908 = vadd.f32 %v775, %v907
  %v909 = vpop.f32.mrb[0].mxu0
  %v910 = vpop.f32.mrb[0].mxu0
  %v911 = vadd.f32 %v775, %v910
  %v912 = vpop.f32.mrb[0].mxu0
  %913 = vmatprep.mubr.bf16.mxu0 0
  %914 = vmatmul.mubr.bf16.gmra.mrb[0].mxu0 %v753
  %v915 = vpop.f32.mrb[0].mxu0
  %v916 = vadd.f32 %v775, %v915
  %v917 = vpop.f32.mrb[0].mxu0
  %v918 = vpop.f32.mrb[0].mxu0
  %v919 = vadd.f32 %v775, %v918
  %v920 = vpop.f32.mrb[0].mxu0
  %921 = vdwg.mxu0
  %922 = vst [vmem:[%s10] sm:$0xff] %v860
  %923 = vst [vmem:[%s10 + $0x8] sm:$0xff] %v863
  %924 = vst [vmem:[%s10 + $0x10] sm:$0xff] %v868
  %925 = vst [vmem:[%s10 + $0x18] sm:$0xff] %v871
  %926 = vst [vmem:[%s10 + $0x20] sm:$0xff] %v876
  %927 = vst [vmem:[%s10 + $0x28] sm:$0xff] %v879
  %928 = vst [vmem:[%s10 + $0x30] sm:$0xff] %v884
  %929 = vst [vmem:[%s10 + $0x38] sm:$0xff] %v887
  %930 = vst [vmem:[%s10 + $0x40] sm:$0xff] %v892
  %931 = vst [vmem:[%s10 + $0x48] sm:$0xff] %v895
  %932 = vst [vmem:[%s10 + $0x50] sm:$0xff] %v900
  %933 = vst [vmem:[%s10 + $0x58] sm:$0xff] %v903
  %934 = vst [vmem:[%s10 + $0x60] sm:$0xff] %v908
  %935 = vst [vmem:[%s10 + $0x68] sm:$0xff] %v911
  %936 = vst [vmem:[%s10 + $0x70] sm:$0xff] %v916
  %937 = vst [vmem:[%s10 + $0x78] sm:$0xff] %v919
  // Predicated region
  $region42: #{rec_model_forward.1} parent=0 // pred_check
    _
  $region43: #{rec_model_forward.1} parent=0 // pred_check_branch
    %939 = sbr.rel (0) target = $region45
  $region44: #{rec_model_forward.1} parent=0 // pred_region
    _
  $region45: #{rec_model_forward.1} parent=0 // pred_fallthru
    _
  // Predicated region
  $region46: #{rec_model_forward.1} parent=0 // pred_check
    _
  $region47: #{rec_model_forward.1} parent=0 // pred_check_branch
    %941 = sbr.rel (0) target = $region49
  $region48: #{rec_model_forward.1} parent=0 // pred_region
    _
  $region49: #{rec_model_forward.1} parent=0 // pred_fallthru
    _

</llo_original>
